<compile_context>
chip_gen: v6e
topology: v6e:2x2x1
jax: 0.10.0
libtpu: 0.0.40
codegen_flags: <defaults>
</compile_context>

<pallas_src>
import jax
import jax.numpy as jnp
from jax.experimental import pallas as pl
from jax.experimental.pallas import tpu as pltpu


def _round_up(x, m):
    return ((x + m - 1) // m) * m


def _critic_kernel(state_ref, action_ref, w1s_ref, w1a_ref, b1_ref,
                   w2_ref, b2_ref, w3_ref, b3_ref, out_ref):
    """One batch tile of the 3-layer MLP. Weights are resident across the grid."""
    # Deliberate bf16 casts: MXU is bf16-native; accumulation stays f32.
    s = state_ref[...].astype(jnp.bfloat16)
    a = action_ref[...].astype(jnp.bfloat16)

    # fc1 + relu -- split GEMM replaces torch.cat([state, action], 1).
    h1 = jnp.dot(s, w1s_ref[...], preferred_element_type=jnp.float32)
    h1 = h1 + jnp.dot(a, w1a_ref[...], preferred_element_type=jnp.float32)
    h1 = jnp.maximum(h1 + b1_ref[...], 0.0)

    # fc2 + relu (bias + ReLU stay in f32 on the VPU).
    h2 = jnp.dot(h1.astype(jnp.bfloat16), w2_ref[...],
                 preferred_element_type=jnp.float32)
    h2 = jnp.maximum(h2 + b2_ref[...], 0.0)

    # fc3 with the batch along the lane axis: (1, H) . (TB, H)^T -> (1, TB).
    # One M=1 MXU push in f32; crucially the result (and the output block) is
    # lane-dense, so the store/writeback is unmasked instead of per-row
    # masked 4-byte stores.
    out_row = jax.lax.dot_general(
        w3_ref[...], h2,
        dimension_numbers=(((1,), (1,)), ((), ())),
        preferred_element_type=jnp.float32)
    out_ref[...] = (out_row + b3_ref[0, 0]).astype(out_ref.dtype)


def _pick_batch_tile(B):
    # Large tiles amortize the ~0.35us/step grid overhead that dominates this
    # tiny-FLOP kernel.
    TB = min(1024, _round_up(B, 8))
    # Keep >= 2 "parallel" grid steps for larger batches so v7x's two
    # TensorCores both get work (each tile stays >= 256 MXU rows); on
    # single-TC v5e/v6e the extra step costs ~0.35us, negligible at that B.
    if B >= 512:
        TB = min(TB, _round_up(pl.cdiv(B, 2), 128))
    return TB


@jax.jit
def critic_forward(state, action, params):
    """state: (B, S), action: (B, A) -> (B, 1), matching Critic.forward."""
    w1s, w1a, b1, w2, b2, w3, b3 = params
    B, S = state.shape
    _, A = action.shape
    H = w2.shape[0]

    TB = _pick_batch_tile(B)
    B_pad = _round_up(B, TB)
    if B_pad != B:
        pad = B_pad - B
        state = jnp.pad(state, ((0, pad), (0, 0)))
        action = jnp.pad(action, ((0, pad), (0, 0)))
    grid_b = B_pad // TB

    resident = lambda shape: pl.BlockSpec(shape, lambda i: (0, 0))

    # Advisory cost so XLA can overlap this latency-bound call with neighbors.
    flops = 2 * B_pad * ((S + A) * H + H * H + H)
    bytes_accessed = ((S + A) * H * 2 + H * H * 2      # bf16 weights
                      + (3 * H + 1) * 4                # f32 biases + w3
                      + B_pad * (S + A) * 4            # input activations
                      + B_pad * 4)                     # output

    out = pl.pallas_call(
        _critic_kernel,
        out_shape=jax.ShapeDtypeStruct((grid_b, 1, TB), jnp.float32),
        grid=(grid_b,),
        in_specs=[
            pl.BlockSpec((TB, S), lambda i: (i, 0)),   # state tile
            pl.BlockSpec((TB, A), lambda i: (i, 0)),   # action tile
            resident((S, H)),                          # w1[:S]   (bf16)
            resident((A, H)),                          # w1[S:]   (bf16)
            resident((1, H)),                          # b1       (f32)
            resident((H, H)),                          # w2       (bf16)
            resident((1, H)),                          # b2       (f32)
            resident((1, H)),                          # w3 torch-layout (f32)
            pl.BlockSpec((1, 1), lambda i: (0, 0),
                         memory_space=pltpu.SMEM),     # b3 scalar in SMEM
        ],
        # Lane-dense output slab: one (1, TB) row per grid step (leading grid
        # dim squeezed in-kernel); reshaped back to (B, 1) below.
        out_specs=pl.BlockSpec((None, 1, TB), lambda i: (i, 0, 0)),
        compiler_params=pltpu.CompilerParams(
            dimension_semantics=("parallel",)),
        cost_estimate=pl.CostEstimate(
            flops=flops, transcendentals=0, bytes_accessed=bytes_accessed),
    )(state, action, w1s, w1a, b1, w2, b2, w3, b3)

    return out.reshape(B_pad, 1)[:B]


def init_critic_params(key, state_size, action_size, hidden=256):
    """Mimics torch.nn.Linear defaults (U(-1/sqrt(fan_in), +)); fc1/fc2 weights
    stored transposed (in, out) and cast to bf16 for the MXU."""
    def linear(k, fan_in, fan_out):
        kw, kb = jax.random.split(k)
        bound = 1.0 / jnp.sqrt(jnp.float32(fan_in))
        w = jax.random.uniform(kw, (fan_in, fan_out), jnp.float32, -bound, bound)
        b = jax.random.uniform(kb, (1, fan_out), jnp.float32, -bound, bound)
        return w, b

    k1, k2, k3 = jax.random.split(key, 3)
    din = state_size + action_size

    w1, b1 = linear(k1, din, hidden)
    w2, b2 = linear(k2, hidden, hidden)
    w3, b3 = linear(k3, hidden, 1)

    # fc1 split replaces the concat; fc1/fc2 weights in bf16 for the MXU.
    w1s = w1[:state_size].astype(jnp.bfloat16)
    w1a = w1[state_size:].astype(jnp.bfloat16)
    w2 = w2.astype(jnp.bfloat16)
    # fc3 kept in torch layout (1, hidden) f32 so the kernel's w3 @ h2^T
    # produces the lane-dense (1, TB) output directly.
    w3t = w3.T                      # (1, hidden)
    b3 = b3.reshape(1, 1)           # scalar in SMEM

    return (w1s, w1a, b1, w2, b2, w3t, b3)


if __name__ == "__main__":
    key = jax.random.PRNGKey(0)
    k_state, k_action, k_params = jax.random.split(key, 3)

    batch, state_size, action_size = 8, 16, 8
    state = jax.random.normal(k_state, (batch, state_size), jnp.float32)
    action = jax.random.normal(k_action, (batch, action_size), jnp.float32)

    params = init_critic_params(k_params, state_size, action_size)

    out = critic_forward(state, action, params)
    out = jax.block_until_ready(out)

    # Reference in plain JAX with identical numerics (bf16 MXU, f32 accum).
    w1s, w1a, b1, w2, b2, w3, b3 = params
    s16 = state.astype(jnp.bfloat16)
    a16 = action.astype(jnp.bfloat16)
    h1 = (jnp.dot(s16, w1s, preferred_element_type=jnp.float32)
          + jnp.dot(a16, w1a, preferred_element_type=jnp.float32) + b1)
    h1 = jnp.maximum(h1, 0.0)
    h2 = jnp.maximum(
        jnp.dot(h1.astype(jnp.bfloat16), w2, preferred_element_type=jnp.float32)
        + b2, 0.0)
    ref = jnp.sum(h2 * w3, axis=-1, keepdims=True) + b3

    assert out.shape == (batch, 1), out.shape
    assert jnp.allclose(out, ref, atol=2e-3, rtol=2e-3), "mismatch vs reference"
    print("KERNEL_OK")
</pallas_src>

<mosaic_0001>
module attributes {stable_mosaic.version = 11 : i64} {
  func.func @_critic_kernel(%arg0: i32, %arg1: memref<8x16xf32, #tpu.memory_space<vmem>>, %arg2: memref<8x8xf32, #tpu.memory_space<vmem>>, %arg3: memref<16x256xbf16, #tpu.memory_space<vmem>>, %arg4: memref<8x256xbf16, #tpu.memory_space<vmem>>, %arg5: memref<1x256xf32, #tpu.memory_space<vmem>>, %arg6: memref<256x256xbf16, #tpu.memory_space<vmem>>, %arg7: memref<1x256xf32, #tpu.memory_space<vmem>>, %arg8: memref<1x256xf32, #tpu.memory_space<vmem>>, %arg9: memref<1x1xf32, #tpu.memory_space<smem>>, %arg10: memref<1x1x8xf32, #tpu.memory_space<vmem>>) attributes {dimension_semantics = [#tpu.dimension_semantics<parallel>], iteration_bounds = array<i64: 1>, scalar_prefetch = 0 : i64, scratch_operands = 0 : i64, tpu.core_type = #tpu.core_type<tc>, window_params = [{transform_indices = @transform_0, window_bounds = array<i64: 8, 16>}, {transform_indices = @transform_1, window_bounds = array<i64: 8, 8>}, {pipeline_mode = #tpu.pipeline_mode<synchronous>, transform_indices = @transform_2, window_bounds = array<i64: 16, 256>}, {pipeline_mode = #tpu.pipeline_mode<synchronous>, transform_indices = @transform_3, window_bounds = array<i64: 8, 256>}, {pipeline_mode = #tpu.pipeline_mode<synchronous>, transform_indices = @transform_4, window_bounds = array<i64: 1, 256>}, {pipeline_mode = #tpu.pipeline_mode<synchronous>, transform_indices = @transform_5, window_bounds = array<i64: 256, 256>}, {pipeline_mode = #tpu.pipeline_mode<synchronous>, transform_indices = @transform_6, window_bounds = array<i64: 1, 256>}, {pipeline_mode = #tpu.pipeline_mode<synchronous>, transform_indices = @transform_7, window_bounds = array<i64: 1, 256>}, {transform_indices = @transform_8, window_bounds = array<i64: 1, 1>}, {transform_indices = @transform_9, window_bounds = array<i64: 1, 1, 8>}]} {
    %c0 = arith.constant 0 : index
    %c0_0 = arith.constant 0 : index
    %0 = vector.load %arg1[%c0, %c0_0] : memref<8x16xf32, #tpu.memory_space<vmem>>, vector<8x16xf32>
    %1 = arith.truncf %0 : vector<8x16xf32> to vector<8x16xbf16>
    %c0_1 = arith.constant 0 : index
    %c0_2 = arith.constant 0 : index
    %2 = vector.load %arg2[%c0_1, %c0_2] : memref<8x8xf32, #tpu.memory_space<vmem>>, vector<8x8xf32>
    %3 = arith.truncf %2 : vector<8x8xf32> to vector<8x8xbf16>
    %c0_3 = arith.constant 0 : index
    %c0_4 = arith.constant 0 : index
    %4 = vector.load %arg3[%c0_3, %c0_4] : memref<16x256xbf16, #tpu.memory_space<vmem>>, vector<16x256xbf16>
    %cst = arith.constant dense<0.000000e+00> : vector<8x256xf32>
    %5 = tpu.matmul %1, %4, %cst {dimension_numbers = #tpu.dot_dimension_numbers<[1], [0], [0], [1], [0, 0, 1, 1], [], []>} : vector<8x16xbf16>, vector<16x256xbf16>, vector<8x256xf32> -> vector<8x256xf32>
    %c0_5 = arith.constant 0 : index
    %c0_6 = arith.constant 0 : index
    %6 = vector.load %arg4[%c0_5, %c0_6] : memref<8x256xbf16, #tpu.memory_space<vmem>>, vector<8x256xbf16>
    %cst_7 = arith.constant dense<0.000000e+00> : vector<8x256xf32>
    %7 = tpu.matmul %3, %6, %cst_7 {dimension_numbers = #tpu.dot_dimension_numbers<[1], [0], [0], [1], [0, 0, 1, 1], [], []>} : vector<8x8xbf16>, vector<8x256xbf16>, vector<8x256xf32> -> vector<8x256xf32>
    %8 = arith.addf %5, %7 : vector<8x256xf32>
    %c0_8 = arith.constant 0 : index
    %c0_9 = arith.constant 0 : index
    %9 = vector.load %arg5[%c0_8, %c0_9] : memref<1x256xf32, #tpu.memory_space<vmem>>, vector<1x256xf32>
    %10 = vector.broadcast %9 : vector<1x256xf32> to vector<8x256xf32>
    %11 = arith.addf %8, %10 : vector<8x256xf32>
    %cst_10 = arith.constant 0.000000e+00 : f32
    %12 = vector.broadcast %cst_10 : f32 to vector<8x256xf32>
    %13 = arith.maximumf %11, %12 : vector<8x256xf32>
    %14 = arith.truncf %13 : vector<8x256xf32> to vector<8x256xbf16>
    %c0_11 = arith.constant 0 : index
    %c0_12 = arith.constant 0 : index
    %15 = vector.load %arg6[%c0_11, %c0_12] : memref<256x256xbf16, #tpu.memory_space<vmem>>, vector<256x256xbf16>
    %cst_13 = arith.constant dense<0.000000e+00> : vector<8x256xf32>
    %16 = tpu.matmul %14, %15, %cst_13 {dimension_numbers = #tpu.dot_dimension_numbers<[1], [0], [0], [1], [0, 0, 1, 1], [], []>} : vector<8x256xbf16>, vector<256x256xbf16>, vector<8x256xf32> -> vector<8x256xf32>
    %c0_14 = arith.constant 0 : index
    %c0_15 = arith.constant 0 : index
    %17 = vector.load %arg7[%c0_14, %c0_15] : memref<1x256xf32, #tpu.memory_space<vmem>>, vector<1x256xf32>
    %18 = vector.broadcast %17 : vector<1x256xf32> to vector<8x256xf32>
    %19 = arith.addf %16, %18 : vector<8x256xf32>
    %cst_16 = arith.constant 0.000000e+00 : f32
    %20 = vector.broadcast %cst_16 : f32 to vector<8x256xf32>
    %21 = arith.maximumf %19, %20 : vector<8x256xf32>
    %c0_17 = arith.constant 0 : index
    %c0_18 = arith.constant 0 : index
    %22 = vector.load %arg8[%c0_17, %c0_18] : memref<1x256xf32, #tpu.memory_space<vmem>>, vector<1x256xf32>
    %cst_19 = arith.constant dense<0.000000e+00> : vector<1x8xf32>
    %23 = tpu.matmul %22, %21, %cst_19 {dimension_numbers = #tpu.dot_dimension_numbers<[1], [1], [0], [0], [0, 0, 1, 0], [], []>} : vector<1x256xf32>, vector<8x256xf32>, vector<1x8xf32> -> vector<1x8xf32>
    %c0_20 = arith.constant 0 : index
    %c0_21 = arith.constant 0 : index
    %24 = memref.load %arg9[%c0_20, %c0_21] : memref<1x1xf32, #tpu.memory_space<smem>>
    %25 = vector.broadcast %24 : f32 to vector<1x8xf32>
    %26 = arith.addf %23, %25 : vector<1x8xf32>
    %c0_22 = arith.constant 0 : index
    %c0_23 = arith.constant 0 : index
    %c0_24 = arith.constant 0 : index
    %27 = vector.load %arg10[%c0_22, %c0_23, %c0_24] : memref<1x1x8xf32, #tpu.memory_space<vmem>>, vector<1x1x8xf32>
    %28 = vector.shape_cast %27 : vector<1x1x8xf32> to vector<1x8xf32>
    %29 = vector.shape_cast %26 : vector<1x8xf32> to vector<1x1x8xf32>
    tpu.vector_store %arg10[%c0_22, %c0_23, %c0_24], %29 {strides = array<i32>} : memref<1x1x8xf32, #tpu.memory_space<vmem>>, vector<1x1x8xf32>,
    return
  }
  func.func @transform_0(%arg0: i32) -> (i32, i32) {
    %c0_i32 = arith.constant 0 : i32
    %c0_i32_0 = arith.constant 0 : i32
    return %arg0, %c0_i32 : i32, i32
  }
  func.func @transform_1(%arg0: i32) -> (i32, i32) {
    %c0_i32 = arith.constant 0 : i32
    %c0_i32_0 = arith.constant 0 : i32
    return %arg0, %c0_i32 : i32, i32
  }
  func.func @transform_2(%arg0: i32) -> (i32, i32) {
    %c0_i32 = arith.constant 0 : i32
    %c0_i32_0 = arith.constant 0 : i32
    %c0_i32_1 = arith.constant 0 : i32
    return %c0_i32, %c0_i32_0 : i32, i32
  }
  func.func @transform_3(%arg0: i32) -> (i32, i32) {
    %c0_i32 = arith.constant 0 : i32
    %c0_i32_0 = arith.constant 0 : i32
    %c0_i32_1 = arith.constant 0 : i32
    return %c0_i32, %c0_i32_0 : i32, i32
  }
  func.func @transform_4(%arg0: i32) -> (i32, i32) {
    %c0_i32 = arith.constant 0 : i32
    %c0_i32_0 = arith.constant 0 : i32
    %c0_i32_1 = arith.constant 0 : i32
    return %c0_i32, %c0_i32_0 : i32, i32
  }
  func.func @transform_5(%arg0: i32) -> (i32, i32) {
    %c0_i32 = arith.constant 0 : i32
    %c0_i32_0 = arith.constant 0 : i32
    %c0_i32_1 = arith.constant 0 : i32
    return %c0_i32, %c0_i32_0 : i32, i32
  }
  func.func @transform_6(%arg0: i32) -> (i32, i32) {
    %c0_i32 = arith.constant 0 : i32
    %c0_i32_0 = arith.constant 0 : i32
    %c0_i32_1 = arith.constant 0 : i32
    return %c0_i32, %c0_i32_0 : i32, i32
  }
  func.func @transform_7(%arg0: i32) -> (i32, i32) {
    %c0_i32 = arith.constant 0 : i32
    %c0_i32_0 = arith.constant 0 : i32
    %c0_i32_1 = arith.constant 0 : i32
    return %c0_i32, %c0_i32_0 : i32, i32
  }
  func.func @transform_8(%arg0: i32) -> (i32, i32) {
    %c0_i32 = arith.constant 0 : i32
    %c0_i32_0 = arith.constant 0 : i32
    %c0_i32_1 = arith.constant 0 : i32
    return %c0_i32, %c0_i32_0 : i32, i32
  }
  func.func @transform_9(%arg0: i32) -> (i32, i32, i32) {
    %c0_i32 = arith.constant 0 : i32
    %c0_i32_0 = arith.constant 0 : i32
    %c0_i32_1 = arith.constant 0 : i32
    return %arg0, %c0_i32, %c0_i32_0 : i32, i32, i32
  }
}

</mosaic_0001>

<llo_original>
// kernel: critic_forward.1
$region0: #{critic_forward.1}
  #allocation0 [shape = 'u32[]', space=smem, size = 0x4, offset = 0x4, fixed_abs, tag = 'smem constant byte address 0x4 - core index']
  #allocation1 [shape = 'u32[144,128]{1,0:T(1,128)}', space=vmem, size = 0x12000, scoped, tag = 'internal scratch']
  #allocation2 [shape = 'f32[1,1]{1,0:T(1,128)S(6)}', space=smem, size = 0x200, scoped, tag = 'scoped memory for critic_forward.1']
  %s0 = inlined_call_operand.hbm [shape: f32[8,16], index: 0, kind: input, shape index: {}]
  %s1 = inlined_call_operand.hbm [shape: f32[8,8], index: 1, kind: input, shape index: {}]
  %s2 = inlined_call_operand.hbm [shape: bf16[16,256], index: 2, kind: input, shape index: {}]
  %s3 = inlined_call_operand.hbm [shape: bf16[8,256], index: 3, kind: input, shape index: {}]
  %s4 = inlined_call_operand.vmem [shape: f32[1,256], index: 4, kind: input, shape index: {}]
  %s5 = inlined_call_operand.hbm [shape: bf16[256,256], index: 5, kind: input, shape index: {}]
  %s6 = inlined_call_operand.vmem [shape: f32[1,256], index: 6, kind: input, shape index: {}]
  %s7 = inlined_call_operand.vmem [shape: f32[1,256], index: 7, kind: input, shape index: {}]
  %s8 = inlined_call_operand.<no memory space> [shape: f32[1,1], index: 8, kind: input, shape index: {}]
  %s9 = inlined_call_operand.hbm [shape: f32[1,1,8], index: 9, kind: output, shape index: {}]
  %s10 = sld [smem:[#allocation0]]
  $region66: #{critic_forward.1} parent=0
    _
  %s12 = ssub.s32 1, %s10
  %s13 = scalar_select 0, %s12, %s10
  %14 = sst [smem:[#allocation2]] %s8
  $region1: #{critic_forward.1} parent=0
    #allocation3 [shape = 'u8[4096]{0}', space=vmem, size = 0x1000, scoped, tag = 'input window, operand 0, single buffered']
    #allocation4 [shape = 's32[1]{0}', space=sflag, size = 0x4, scoped, tag = 'scoped memory for critic_forward.1']
    #allocation5 [shape = 's32[1]{0}', space=sflag, size = 0x4, scoped, tag = 'scoped memory for critic_forward.1']
    #allocation6 [shape = 'u8[4096]{0}', space=vmem, size = 0x1000, scoped, tag = 'input window, operand 1, single buffered']
    #allocation7 [shape = 's32[1]{0}', space=sflag, size = 0x4, scoped, tag = 'scoped memory for critic_forward.1']
    #allocation8 [shape = 'u8[8192]{0}', space=vmem, size = 0x2000, scoped, tag = 'input window, operand 2, single buffered']
    #allocation9 [shape = 'u8[4096]{0}', space=vmem, size = 0x1000, scoped, tag = 'input window, operand 3, single buffered']
    #allocation10 [shape = 's32[1]{0}', space=sflag, size = 0x4, scoped, tag = 'scoped memory for critic_forward.1']
    #allocation11 [shape = 'u8[131072]{0}', space=vmem, size = 0x20000, scoped, tag = 'input window, operand 5, single buffered']
    #allocation12 [shape = 'u8[512]{0}', space=vmem, size = 0x400, scoped, tag = 'output window, operand 0, single buffered']
    %15 = vsyncpa [#allocation4], 0
    %16 = vsyncpa [#allocation7], 0
    %17 = vsyncpa [#allocation10], 0
    %18 = vsyncpa [#allocation5], 0
    // Predicated region
    $region2: #{critic_forward.1} parent=1 // pred_check
      _
    $region3: #{critic_forward.1} parent=1 // pred_check_branch
      %20 = sbr.rel (0) target = $region5
    $region4: #{critic_forward.1} parent=1 // pred_region
      %s22 = ssub.s32 128, 128
      %23 = vsyncadd [#allocation4], %s22
      %s25 = sshll.u32 [#allocation3], 4
      %s26 = int_to_ptr.vmem [resolvable:$true] %s25
      %28 = dma.hbm_to_vmem [thread:$0]  %s0, 128, %s26, [#allocation4]
    $region5: #{critic_forward.1} parent=1 // pred_fallthru
      _
    // Predicated region
    $region6: #{critic_forward.1} parent=1 // pred_check
      _
    $region7: #{critic_forward.1} parent=1 // pred_check_branch
      %30 = sbr.rel (0) target = $region9
    $region8: #{critic_forward.1} parent=1 // pred_region
      %s32 = ssub.s32 128, 128
      %33 = vsyncadd [#allocation7], %s32
      %s35 = sshll.u32 [#allocation6], 4
      %s36 = int_to_ptr.vmem [resolvable:$true] %s35
      %38 = dma.hbm_to_vmem [thread:$0]  %s1, 128, %s36, [#allocation7]
    $region9: #{critic_forward.1} parent=1 // pred_fallthru
      _
    // Predicated region
    $region10: #{critic_forward.1} parent=1 // pred_check
      _
    $region11: #{critic_forward.1} parent=1 // pred_check_branch
      %40 = sbr.rel (0) target = $region13
    $region12: #{critic_forward.1} parent=1 // pred_region
      %s42 = ssub.s32 256, 256
      %43 = vsyncadd [#allocation7], %s42
      %s44 = sshll.u32 [#allocation8], 4
      %s45 = int_to_ptr.vmem [resolvable:$true] %s44
      %50 = dma.hbm_to_vmem [thread:$0]  %s2, 256, %s45, [#allocation7], 128, 128, 8
    $region13: #{critic_forward.1} parent=1 // pred_fallthru
      _
    // Predicated region
    $region14: #{critic_forward.1} parent=1 // pred_check
      _
    $region15: #{critic_forward.1} parent=1 // pred_check_branch
      %52 = sbr.rel (0) target = $region17
    $region16: #{critic_forward.1} parent=1 // pred_region
      %s54 = ssub.s32 128, 128
      %55 = vsyncadd [#allocation10], %s54
      %s57 = sshll.u32 [#allocation9], 4
      %s58 = int_to_ptr.vmem [resolvable:$true] %s57
      %60 = dma.hbm_to_vmem [thread:$0]  %s3, 128, %s58, [#allocation10]
    $region17: #{critic_forward.1} parent=1 // pred_fallthru
      _
    // Predicated region
    $region18: #{critic_forward.1} parent=1 // pred_check
      _
    $region19: #{critic_forward.1} parent=1 // pred_check_branch
      %62 = sbr.rel (0) target = $region21
    $region20: #{critic_forward.1} parent=1 // pred_region
      _
    $region21: #{critic_forward.1} parent=1 // pred_fallthru
      _
    // Predicated region
    $region22: #{critic_forward.1} parent=1 // pred_check
      _
    $region23: #{critic_forward.1} parent=1 // pred_check_branch
      %64 = sbr.rel (0) target = $region25
    $region24: #{critic_forward.1} parent=1 // pred_region
      %s66 = ssub.s32 4096, 4096
      %67 = vsyncadd [#allocation10], %s66
      %s68 = sshll.u32 [#allocation11], 4
      %s69 = int_to_ptr.vmem [resolvable:$true] %s68
      %74 = dma.hbm_to_vmem [thread:$0]  %s5, 4096, %s69, [#allocation10], 128, 128, 8
    $region25: #{critic_forward.1} parent=1 // pred_fallthru
      _
    // Predicated region
    $region26: #{critic_forward.1} parent=1 // pred_check
      _
    $region27: #{critic_forward.1} parent=1 // pred_check_branch
      %76 = sbr.rel (0) target = $region29
    $region28: #{critic_forward.1} parent=1 // pred_region
      _
    $region29: #{critic_forward.1} parent=1 // pred_fallthru
      _
    // Predicated region
    $region30: #{critic_forward.1} parent=1 // pred_check
      _
    $region31: #{critic_forward.1} parent=1 // pred_check_branch
      %78 = sbr.rel (0) target = $region33
    $region32: #{critic_forward.1} parent=1 // pred_region
      _
    $region33: #{critic_forward.1} parent=1 // pred_fallthru
      _
    // Predicated region
    $region34: #{critic_forward.1} parent=1 // pred_check
      _
    $region35: #{critic_forward.1} parent=1 // pred_check_branch
      %80 = sbr.rel (0) target = $region37
    $region36: #{critic_forward.1} parent=1 // pred_region
      _
    $region37: #{critic_forward.1} parent=1 // pred_fallthru
      _
    // Predicated region
    $region38: #{critic_forward.1} parent=1 // pred_check
      _
    $region39: #{critic_forward.1} parent=1 // pred_check_branch
      %82 = sbr.rel (0) target = $region41
    $region40: #{critic_forward.1} parent=1 // pred_region
      %83 = dma.done [#allocation4], 128
    $region41: #{critic_forward.1} parent=1 // pred_fallthru
      _
    // Predicated region
    $region42: #{critic_forward.1} parent=1 // pred_check
      _
    $region43: #{critic_forward.1} parent=1 // pred_check_branch
      %85 = sbr.rel (0) target = $region45
    $region44: #{critic_forward.1} parent=1 // pred_region
      %86 = dma.done [#allocation7], 128
    $region45: #{critic_forward.1} parent=1 // pred_fallthru
      _
    // Predicated region
    $region46: #{critic_forward.1} parent=1 // pred_check
      _
    $region47: #{critic_forward.1} parent=1 // pred_check_branch
      %88 = sbr.rel (0) target = $region49
    $region48: #{critic_forward.1} parent=1 // pred_region
      %89 = dma.done [#allocation7], 256
    $region49: #{critic_forward.1} parent=1 // pred_fallthru
      _
    // Predicated region
    $region50: #{critic_forward.1} parent=1 // pred_check
      _
    $region51: #{critic_forward.1} parent=1 // pred_check_branch
      %91 = sbr.rel (0) target = $region53
    $region52: #{critic_forward.1} parent=1 // pred_region
      %92 = dma.done [#allocation10], 128
    $region53: #{critic_forward.1} parent=1 // pred_fallthru
      _
    // Predicated region
    $region54: #{critic_forward.1} parent=1 // pred_check
      _
    $region55: #{critic_forward.1} parent=1 // pred_check_branch
      %94 = sbr.rel (0) target = $region57
    $region56: #{critic_forward.1} parent=1 // pred_region
      %95 = dma.done [#allocation10], 4096
    $region57: #{critic_forward.1} parent=1 // pred_fallthru
      _
    %v97 = vld [vmem:[#allocation3] sm:$0xff]
    %v98 = vpack.c.bf16 %v97, %v97
    %v99 = vld [vmem:[#allocation6] sm:$0xff]
    %v100 = vpack.c.bf16 %v99, %v99
    %v101 = vld [vmem:[#allocation8] sm:$0xff]
    %v102 = vld [vmem:[#allocation8 + $0x8] sm:$0xff]
    %v103 = vld [vmem:[#allocation9] sm:$0xff]
    %v105 = vunpack.c.l.b16 %v103
    %v106 = vunpack.c.h.b16 %v103
    %v107 = vpack.c.b16 %v105, %v105
    %v108 = vpack.c.b16 %v106, %v106
    %vm109 = vcmask 64512
    %v111 = vsel %vm109, %v100, 0
    %vm113 = vcmask 1043456
    %v115 = vsel %vm113, %v107, 0
    %v118 = vsel %vm113, %v108, 0
    %120 = vmatprep.subr.bf16.mxu0 0
    %121 = vmatpush1.bf16.msra.mxu0 0
    %122 = vmatprep.subr.bf16.mxu0 0
    %123 = vmatpush1.bf16.msra.mxu0 0
    %124 = vmatprep.subr.bf16.mxu0 0
    %125 = vmatpush1.bf16.msra.mxu0 0
    %126 = vmatprep.subr.bf16.mxu0 0
    %127 = vmatpush1.bf16.msra.mxu0 0
    %128 = vmatprep.subr.bf16.mxu0 0
    %129 = vmatpush1.bf16.msra.mxu0 0
    %130 = vmatprep.subr.bf16.mxu0 0
    %131 = vmatpush1.bf16.msra.mxu0 0
    %132 = vmatprep.subr.bf16.mxu0 0
    %133 = vmatpush1.bf16.msra.mxu0 0
    %134 = vmatprep.subr.bf16.mxu0 %v118
    %135 = vmatpush1.bf16.msra.mxu0 %v115
    %136 = vmatprep.subr.bf16.mxu0 0
    %137 = vmatpush2.bf16.msra.mxu0 0
    %138 = vmatprep.subr.bf16.mxu0 0
    %139 = vmatpush2.bf16.msra.mxu0 0
    %140 = vmatprep.subr.bf16.mxu0 0
    %141 = vmatpush2.bf16.msra.mxu0 0
    %142 = vmatprep.subr.bf16.mxu0 0
    %143 = vmatpush2.bf16.msra.mxu0 0
    %144 = vmatprep.subr.bf16.mxu0 0
    %145 = vmatpush2.bf16.msra.mxu0 0
    %146 = vmatprep.subr.bf16.mxu0 0
    %147 = vmatpush2.bf16.msra.mxu0 0
    %148 = vmatprep.subr.bf16.mxu0 0
    %149 = vmatpush2.bf16.msra.mxu0 0
    %150 = vmatprep.subr.bf16.mxu0 0
    %151 = vmatpush2.bf16.msra.mxu0 0
    %152 = vmatprep.mubr.bf16.mxu0 0
    %153 = vmatmul.mubr.bf16.gmra.mxu0 %v111
    %v154 = vpop.f32.mrf.mxu0
    %v155 = vadd.f32 0.0, %v154
    %v156 = vpop.f32.mrf.mxu0
    %v157 = vadd.f32 0.0, %v156
    %v158 = vpop.f32.mrf.mxu0
    %v159 = vpop.f32.mrf.mxu0
    %160 = vdwg.mxu0
    %v163 = vunpack.c.l.b16 %v101
    %v164 = vunpack.c.h.b16 %v101
    %v165 = vunpack.c.l.b16 %v102
    %v166 = vunpack.c.h.b16 %v102
    %v167 = vpack.c.b16 %v165, %v163
    %v168 = vpack.c.b16 %v166, %v164
    %vm171 = vcmask 130048
    %v173 = vsel %vm171, %v98, 0
    %175 = vmatprep.subr.bf16.mxu0 0
    %176 = vmatpush1.bf16.msra.mxu0 0
    %177 = vmatprep.subr.bf16.mxu0 0
    %178 = vmatpush1.bf16.msra.mxu0 0
    %179 = vmatprep.subr.bf16.mxu0 0
    %180 = vmatpush1.bf16.msra.mxu0 0
    %181 = vmatprep.subr.bf16.mxu0 0
    %182 = vmatpush1.bf16.msra.mxu0 0
    %183 = vmatprep.subr.bf16.mxu0 0
    %184 = vmatpush1.bf16.msra.mxu0 0
    %185 = vmatprep.subr.bf16.mxu0 0
    %186 = vmatpush1.bf16.msra.mxu0 0
    %187 = vmatprep.subr.bf16.mxu0 0
    %188 = vmatpush1.bf16.msra.mxu0 0
    %189 = vmatprep.subr.bf16.mxu0 %v168
    %190 = vmatpush1.bf16.msra.mxu0 %v167
    %191 = vmatprep.subr.bf16.mxu0 0
    %192 = vmatpush2.bf16.msra.mxu0 0
    %193 = vmatprep.subr.bf16.mxu0 0
    %194 = vmatpush2.bf16.msra.mxu0 0
    %195 = vmatprep.subr.bf16.mxu0 0
    %196 = vmatpush2.bf16.msra.mxu0 0
    %197 = vmatprep.subr.bf16.mxu0 0
    %198 = vmatpush2.bf16.msra.mxu0 0
    %199 = vmatprep.subr.bf16.mxu0 0
    %200 = vmatpush2.bf16.msra.mxu0 0
    %201 = vmatprep.subr.bf16.mxu0 0
    %202 = vmatpush2.bf16.msra.mxu0 0
    %203 = vmatprep.subr.bf16.mxu0 0
    %204 = vmatpush2.bf16.msra.mxu0 0
    %205 = vmatprep.subr.bf16.mxu0 0
    %206 = vmatpush2.bf16.msra.mxu0 0
    %207 = vmatprep.mubr.bf16.mxu0 0
    %208 = vmatmul.mubr.bf16.gmra.mxu0 %v173
    %v209 = vpop.f32.mrf.mxu0
    %v210 = vadd.f32 %v155, %v209
    %v211 = vpop.f32.mrf.mxu0
    %v212 = vadd.f32 %v157, %v211
    %v213 = vpop.f32.mrf.mxu0
    %v214 = vpop.f32.mrf.mxu0
    %215 = vdwg.mxu0
    %v216 = vld [vmem:[%s4] sm:$0x3]
    %v218 = vlaneseq
    %v219 = vshrl.u32 %v218, 7
    %v220 = vsub.s32 0, %v219
    %v221 = vrot.slane %v216, %v220
    %v222 = vlaneseq
    %v223 = vshrl.u32 %v222, 7
    %v224 = vsub.s32 1, %v223
    %v225 = vrot.slane %v216, %v224
    %v228 = vadd.f32 %v210, %v221
    %v229 = vadd.f32 %v212, %v225
    %v230 = vmax.f32 %v228, 0.0
    %v231 = vmax.f32 %v229, 0.0
    %v232 = vpack.c.bf16 %v230, %v230
    %v233 = vpack.c.bf16 %v231, %v231
    %v234 = vld [vmem:[#allocation11] sm:$0xff]
    %v235 = vld [vmem:[#allocation11 + $0x8] sm:$0xff]
    %v236 = vld [vmem:[#allocation11 + $0x10] sm:$0xff]
    %v237 = vld [vmem:[#allocation11 + $0x18] sm:$0xff]
    %v238 = vld [vmem:[#allocation11 + $0x20] sm:$0xff]
    %v239 = vld [vmem:[#allocation11 + $0x28] sm:$0xff]
    %v240 = vld [vmem:[#allocation11 + $0x30] sm:$0xff]
    %v241 = vld [vmem:[#allocation11 + $0x38] sm:$0xff]
    %v242 = vld [vmem:[#allocation11 + $0x40] sm:$0xff]
    %v243 = vld [vmem:[#allocation11 + $0x48] sm:$0xff]
    %v244 = vld [vmem:[#allocation11 + $0x50] sm:$0xff]
    %v245 = vld [vmem:[#allocation11 + $0x58] sm:$0xff]
    %v246 = vld [vmem:[#allocation11 + $0x60] sm:$0xff]
    %v247 = vld [vmem:[#allocation11 + $0x68] sm:$0xff]
    %v248 = vld [vmem:[#allocation11 + $0x70] sm:$0xff]
    %v249 = vld [vmem:[#allocation11 + $0x78] sm:$0xff]
    %v250 = vld [vmem:[#allocation11 + $0x80] sm:$0xff]
    %v251 = vld [vmem:[#allocation11 + $0x88] sm:$0xff]
    %v252 = vld [vmem:[#allocation11 + $0x90] sm:$0xff]
    %v253 = vld [vmem:[#allocation11 + $0x98] sm:$0xff]
    %v254 = vld [vmem:[#allocation11 + $0xa0] sm:$0xff]
    %v255 = vld [vmem:[#allocation11 + $0xa8] sm:$0xff]
    %v256 = vld [vmem:[#allocation11 + $0xb0] sm:$0xff]
    %v257 = vld [vmem:[#allocation11 + $0xb8] sm:$0xff]
    %v258 = vld [vmem:[#allocation11 + $0xc0] sm:$0xff]
    %v259 = vld [vmem:[#allocation11 + $0xc8] sm:$0xff]
    %v260 = vld [vmem:[#allocation11 + $0xd0] sm:$0xff]
    %v261 = vld [vmem:[#allocation11 + $0xd8] sm:$0xff]
    %v262 = vld [vmem:[#allocation11 + $0xe0] sm:$0xff]
    %v263 = vld [vmem:[#allocation11 + $0xe8] sm:$0xff]
    %v264 = vld [vmem:[#allocation11 + $0xf0] sm:$0xff]
    %v265 = vld [vmem:[#allocation11 + $0xf8] sm:$0xff]
    %v266 = vld [vmem:[%s6] sm:$0x3]
    %v268 = vlaneseq
    %v269 = vshrl.u32 %v268, 7
    %v270 = vsub.s32 0, %v269
    %v271 = vrot.slane %v266, %v270
    %v272 = vlaneseq
    %v273 = vshrl.u32 %v272, 7
    %v274 = vsub.s32 1, %v273
    %v275 = vrot.slane %v266, %v274
    %v310 = vunpack.c.l.b16 %v234
    %v311 = vunpack.c.h.b16 %v234
    %v312 = vunpack.c.l.b16 %v235
    %v313 = vunpack.c.h.b16 %v235
    %v314 = vunpack.c.l.b16 %v236
    %v315 = vunpack.c.h.b16 %v236
    %v316 = vunpack.c.l.b16 %v237
    %v317 = vunpack.c.h.b16 %v237
    %v318 = vunpack.c.l.b16 %v238
    %v319 = vunpack.c.h.b16 %v238
    %v320 = vunpack.c.l.b16 %v239
    %v321 = vunpack.c.h.b16 %v239
    %v322 = vunpack.c.l.b16 %v240
    %v323 = vunpack.c.h.b16 %v240
    %v324 = vunpack.c.l.b16 %v241
    %v325 = vunpack.c.h.b16 %v241
    %v326 = vunpack.c.l.b16 %v242
    %v327 = vunpack.c.h.b16 %v242
    %v328 = vunpack.c.l.b16 %v243
    %v329 = vunpack.c.h.b16 %v243
    %v330 = vunpack.c.l.b16 %v244
    %v331 = vunpack.c.h.b16 %v244
    %v332 = vunpack.c.l.b16 %v245
    %v333 = vunpack.c.h.b16 %v245
    %v334 = vunpack.c.l.b16 %v246
    %v335 = vunpack.c.h.b16 %v246
    %v336 = vunpack.c.l.b16 %v247
    %v337 = vunpack.c.h.b16 %v247
    %v338 = vunpack.c.l.b16 %v248
    %v339 = vunpack.c.h.b16 %v248
    %v340 = vunpack.c.l.b16 %v249
    %v341 = vunpack.c.h.b16 %v249
    %v342 = vunpack.c.l.b16 %v250
    %v343 = vunpack.c.h.b16 %v250
    %v344 = vunpack.c.l.b16 %v251
    %v345 = vunpack.c.h.b16 %v251
    %v346 = vunpack.c.l.b16 %v252
    %v347 = vunpack.c.h.b16 %v252
    %v348 = vunpack.c.l.b16 %v253
    %v349 = vunpack.c.h.b16 %v253
    %v350 = vunpack.c.l.b16 %v254
    %v351 = vunpack.c.h.b16 %v254
    %v352 = vunpack.c.l.b16 %v255
    %v353 = vunpack.c.h.b16 %v255
    %v354 = vunpack.c.l.b16 %v256
    %v355 = vunpack.c.h.b16 %v256
    %v356 = vunpack.c.l.b16 %v257
    %v357 = vunpack.c.h.b16 %v257
    %v358 = vunpack.c.l.b16 %v258
    %v359 = vunpack.c.h.b16 %v258
    %v360 = vunpack.c.l.b16 %v259
    %v361 = vunpack.c.h.b16 %v259
    %v362 = vunpack.c.l.b16 %v260
    %v363 = vunpack.c.h.b16 %v260
    %v364 = vunpack.c.l.b16 %v261
    %v365 = vunpack.c.h.b16 %v261
    %v366 = vunpack.c.l.b16 %v262
    %v367 = vunpack.c.h.b16 %v262
    %v368 = vunpack.c.l.b16 %v263
    %v369 = vunpack.c.h.b16 %v263
    %v370 = vunpack.c.l.b16 %v264
    %v371 = vunpack.c.h.b16 %v264
    %v372 = vunpack.c.l.b16 %v265
    %v373 = vunpack.c.h.b16 %v265
    %v374 = vpack.c.b16 %v312, %v310
    %v375 = vpack.c.b16 %v313, %v311
    %v376 = vpack.c.b16 %v316, %v314
    %v377 = vpack.c.b16 %v317, %v315
    %v378 = vpack.c.b16 %v320, %v318
    %v379 = vpack.c.b16 %v321, %v319
    %v380 = vpack.c.b16 %v324, %v322
    %v381 = vpack.c.b16 %v325, %v323
    %v382 = vpack.c.b16 %v328, %v326
    %v383 = vpack.c.b16 %v329, %v327
    %v384 = vpack.c.b16 %v332, %v330
    %v385 = vpack.c.b16 %v333, %v331
    %v386 = vpack.c.b16 %v336, %v334
    %v387 = vpack.c.b16 %v337, %v335
    %v388 = vpack.c.b16 %v340, %v338
    %v389 = vpack.c.b16 %v341, %v339
    %v390 = vpack.c.b16 %v344, %v342
    %v391 = vpack.c.b16 %v345, %v343
    %v392 = vpack.c.b16 %v348, %v346
    %v393 = vpack.c.b16 %v349, %v347
    %v394 = vpack.c.b16 %v352, %v350
    %v395 = vpack.c.b16 %v353, %v351
    %v396 = vpack.c.b16 %v356, %v354
    %v397 = vpack.c.b16 %v357, %v355
    %v398 = vpack.c.b16 %v360, %v358
    %v399 = vpack.c.b16 %v361, %v359
    %v400 = vpack.c.b16 %v364, %v362
    %v401 = vpack.c.b16 %v365, %v363
    %v402 = vpack.c.b16 %v368, %v366
    %v403 = vpack.c.b16 %v369, %v367
    %v404 = vpack.c.b16 %v372, %v370
    %v405 = vpack.c.b16 %v373, %v371
    %438 = vmatprep.subr.bf16.mxu0 %v389
    %439 = vmatpush1.bf16.msra.mxu0 %v388
    %440 = vmatprep.subr.bf16.mxu0 %v387
    %441 = vmatpush1.bf16.msra.mxu0 %v386
    %442 = vmatprep.subr.bf16.mxu0 %v385
    %443 = vmatpush1.bf16.msra.mxu0 %v384
    %444 = vmatprep.subr.bf16.mxu0 %v383
    %445 = vmatpush1.bf16.msra.mxu0 %v382
    %446 = vmatprep.subr.bf16.mxu0 %v381
    %447 = vmatpush1.bf16.msra.mxu0 %v380
    %448 = vmatprep.subr.bf16.mxu0 %v379
    %449 = vmatpush1.bf16.msra.mxu0 %v378
    %450 = vmatprep.subr.bf16.mxu0 %v377
    %451 = vmatpush1.bf16.msra.mxu0 %v376
    %452 = vmatprep.subr.bf16.mxu0 %v375
    %453 = vmatpush1.bf16.msra.mxu0 %v374
    %454 = vmatprep.subr.bf16.mxu0 %v405
    %455 = vmatpush2.bf16.msra.mxu0 %v404
    %456 = vmatprep.subr.bf16.mxu0 %v403
    %457 = vmatpush2.bf16.msra.mxu0 %v402
    %458 = vmatprep.subr.bf16.mxu0 %v401
    %459 = vmatpush2.bf16.msra.mxu0 %v400
    %460 = vmatprep.subr.bf16.mxu0 %v399
    %461 = vmatpush2.bf16.msra.mxu0 %v398
    %462 = vmatprep.subr.bf16.mxu0 %v397
    %463 = vmatpush2.bf16.msra.mxu0 %v396
    %464 = vmatprep.subr.bf16.mxu0 %v395
    %465 = vmatpush2.bf16.msra.mxu0 %v394
    %466 = vmatprep.subr.bf16.mxu0 %v393
    %467 = vmatpush2.bf16.msra.mxu0 %v392
    %468 = vmatprep.subr.bf16.mxu0 %v391
    %469 = vmatpush2.bf16.msra.mxu0 %v390
    %470 = vmatprep.mubr.bf16.mxu0 %v233
    %471 = vmatmul.mubr.bf16.gmra.mxu0 %v232
    %v472 = vpop.f32.mrf.mxu0
    %v473 = vadd.f32 %v271, %v472
    %v474 = vpop.f32.mrf.mxu0
    %v475 = vadd.f32 %v275, %v474
    %v476 = vpop.f32.mrf.mxu0
    %v477 = vpop.f32.mrf.mxu0
    %478 = vdwg.mxu0
    %v479 = vmax.f32 %v473, 0.0
    %v480 = vmax.f32 %v475, 0.0
    %v481 = vld [vmem:[%s7] sm:$0x3]
    %s482 = sld [smem:[#allocation2]]
    %v483 = vstv %s482
    %v485 = vlaneseq
    %v486 = vshrl.u32 %v485, 7
    %v487 = vsub.s32 0, %v486
    %v488 = vrot.slane %v481, %v487
    %v489 = vlaneseq
    %v490 = vshrl.u32 %v489, 7
    %v491 = vsub.s32 1, %v490
    %v492 = vrot.slane %v481, %v491
    %495 = vmatprep.subr.mxu0 0.0
    %496 = vmatpush1.xpose.msra.mxu0 0.0
    %497 = vmatprep.subr.mxu0 0.0
    %498 = vmatpush1.xpose.msra.mxu0 0.0
    %499 = vmatprep.subr.mxu0 0.0
    %500 = vmatpush1.xpose.msra.mxu0 0.0
    %501 = vmatprep.subr.mxu0 0.0
    %502 = vmatpush1.xpose.msra.mxu0 0.0
    %503 = vmatprep.subr.mxu0 0.0
    %504 = vmatpush1.xpose.msra.mxu0 0.0
    %505 = vmatprep.subr.mxu0 0.0
    %506 = vmatpush1.xpose.msra.mxu0 0.0
    %507 = vmatprep.subr.mxu0 0.0
    %508 = vmatpush1.xpose.msra.mxu0 0.0
    %509 = vmatprep.subr.mxu0 0.0
    %510 = vmatpush1.xpose.msra.mxu0 0.0
    %511 = vmatprep.subr.mxu0 0.0
    %512 = vmatpush1.xpose.msra.mxu0 0.0
    %513 = vmatprep.subr.mxu0 0.0
    %514 = vmatpush1.xpose.msra.mxu0 0.0
    %515 = vmatprep.subr.mxu0 0.0
    %516 = vmatpush1.xpose.msra.mxu0 0.0
    %517 = vmatprep.subr.mxu0 0.0
    %518 = vmatpush1.xpose.msra.mxu0 0.0
    %519 = vmatprep.subr.mxu0 0.0
    %520 = vmatpush1.xpose.msra.mxu0 0.0
    %521 = vmatprep.subr.mxu0 0.0
    %522 = vmatpush1.xpose.msra.mxu0 0.0
    %523 = vmatprep.subr.mxu0 0.0
    %524 = vmatpush1.xpose.msra.mxu0 0.0
    %525 = vmatprep.subr.mxu0 %v480
    %526 = vmatpush1.xpose.msra.mxu0 %v479
    %527 = vmatprep.subr.mxu0 0.0
    %528 = vmatpush2.xpose.msra.mxu0 0.0
    %529 = vmatprep.subr.mxu0 0.0
    %530 = vmatpush2.xpose.msra.mxu0 0.0
    %531 = vmatprep.subr.mxu0 0.0
    %532 = vmatpush2.xpose.msra.mxu0 0.0
    %533 = vmatprep.subr.mxu0 0.0
    %534 = vmatpush2.xpose.msra.mxu0 0.0
    %535 = vmatprep.subr.mxu0 0.0
    %536 = vmatpush2.xpose.msra.mxu0 0.0
    %537 = vmatprep.subr.mxu0 0.0
    %538 = vmatpush2.xpose.msra.mxu0 0.0
    %539 = vmatprep.subr.mxu0 0.0
    %540 = vmatpush2.xpose.msra.mxu0 0.0
    %541 = vmatprep.subr.mxu0 0.0
    %542 = vmatpush2.xpose.msra.mxu0 0.0
    %543 = vmatprep.subr.mxu0 0.0
    %544 = vmatpush2.xpose.msra.mxu0 0.0
    %545 = vmatprep.subr.mxu0 0.0
    %546 = vmatpush2.xpose.msra.mxu0 0.0
    %547 = vmatprep.subr.mxu0 0.0
    %548 = vmatpush2.xpose.msra.mxu0 0.0
    %549 = vmatprep.subr.mxu0 0.0
    %550 = vmatpush2.xpose.msra.mxu0 0.0
    %551 = vmatprep.subr.mxu0 0.0
    %552 = vmatpush2.xpose.msra.mxu0 0.0
    %553 = vmatprep.subr.mxu0 0.0
    %554 = vmatpush2.xpose.msra.mxu0 0.0
    %555 = vmatprep.subr.mxu0 0.0
    %556 = vmatpush2.xpose.msra.mxu0 0.0
    %557 = vmatprep.subr.mxu0 0.0
    %558 = vmatpush2.xpose.msra.mxu0 0.0
    %559 = vmatprep.mubr.f32.mxu0 %v492
    %560 = vmatmul.mubr.f32.gmra.mxu0 %v488
    %v561 = vpop.f32.mrf.mxu0
    %v562 = vadd.f32 %v483, %v561
    %v563 = vpop.f32.mrf.mxu0
    %564 = vdwg.mxu0
    %vm565 = vcmask 57344
    %566 = vst.msk [vmem:[#allocation12] sm:$0x1] %vm565, %v562
    // Predicated region
    $region58: #{critic_forward.1} parent=1 // pred_check
      _
    $region59: #{critic_forward.1} parent=1 // pred_check_branch
      %568 = sbr.rel (0) target = $region61
    $region60: #{critic_forward.1} parent=1 // pred_region
      %s570 = ssub.s32 16, 16
      %571 = vsyncadd [#allocation5], %s570
      %s573 = sshll.u32 [#allocation12], 4
      %s574 = int_to_ptr.vmem [resolvable:$true] %s573
      %576 = dma.vmem_to_hbm [thread:$0]  %s574, 16, %s9, [#allocation5]
    $region61: #{critic_forward.1} parent=1 // pred_fallthru
      _
    // Predicated region
    $region62: #{critic_forward.1} parent=1 // pred_check
      _
    $region63: #{critic_forward.1} parent=1 // pred_check_branch
      %578 = sbr.rel (0) target = $region65
    $region64: #{critic_forward.1} parent=1 // pred_region
      %579 = dma.done [#allocation5], 16
    $region65: #{critic_forward.1} parent=1 // pred_fallthru
      _
    %580 = vsyncpa [#allocation4], 1
    %581 = vsyncpa [#allocation7], 1
    %582 = vsyncpa [#allocation10], 1
    %583 = vsyncpa [#allocation5], 1

</llo_original>
